<compile_context>
chip_gen: v7x
topology: tpu7x:2x2x1
jax: 0.10.0
libtpu: 0.0.40
codegen_flags: <defaults>
</compile_context>

<pallas_src>
import functools

import jax
import jax.numpy as jnp
from jax.experimental import pallas as pl
from jax.experimental.pallas import tpu as pltpu


# ----------------------------------------------------------------------------
# small helpers
# ----------------------------------------------------------------------------
def _round_up(x, m):
    return (x + m - 1) // m * m


def _vmem_ceiling():
    """Per-chip scoped-VMEM ceiling (~50% of physical leaves compiler headroom:
    ~32 MiB on v7x's 64 MiB VMEM, ~64 MiB on v5e/v6e's 128 MiB)."""
    cap = 128 * 2**20
    try:
        cap = int(getattr(pltpu.get_tpu_info(), "vmem_capacity_bytes", cap))
    except Exception:
        pass
    return max(16 * 2**20, int(cap * 0.5))


def _vmem_request(raw_bytes, ceiling):
    """raw buffer bytes + ~50% headroom, clamped to the per-chip ceiling."""
    want = int(1.5 * raw_bytes) + (4 << 20)
    return int(min(ceiling, max(want, 16 << 20)))


# ----------------------------------------------------------------------------
# Kernel 1: tiled encoder GEMM + ReLU  (stacked 2B batch, bf16 MXU operands)
# ----------------------------------------------------------------------------
def encoder_kernel(x_ref, w_ref, h_ref, acc_ref):
    k = pl.program_id(1)

    @pl.when(k == 0)
    def _():
        acc_ref[...] = jnp.zeros_like(acc_ref)

    acc_ref[...] += jnp.dot(x_ref[...], w_ref[...],
                            preferred_element_type=jnp.float32)

    @pl.when(k == pl.num_programs(1) - 1)
    def _():
        # ReLU fused into the finalize; h written back as bf16 (the head kernel
        # feeds it straight to the MXU anyway).
        h_ref[...] = jnp.maximum(acc_ref[...], 0.0).astype(h_ref.dtype)


def _pick_tile_k(d_pad, cap=512):
    # prefer >=256 to fill the 256x256 MXU on v6e/v7x; 128 always divides.
    for t in (512, 384, 256, 128):
        if t <= cap and d_pad % t == 0:
            return t
    return 128


def _pick_tile_m(m2, cap=256):
    if m2 < 16:
        return m2, m2                         # full-dim block (allowed)
    # sublane-aligned tile, capped, and <= m2//2 so the 'parallel' batch axis
    # has >=2 programs (v7x dual TensorCore); pad the ragged last tile.
    tile = max(8, (min(cap, m2 // 2) // 8) * 8)
    return tile, _round_up(m2, tile)


def _encode(x_bf16, w_bf16):
    """x_bf16: (2B, d_in) bf16, w_bf16: (d_in, n_out) bf16 -> (2B, n_out) bf16."""
    m2, d_in = x_bf16.shape
    n_out = w_bf16.shape[1]

    d_pad = _round_up(d_in, 128)              # never tile_k = d_in
    tile_k = _pick_tile_k(d_pad)
    tile_m, m_pad = _pick_tile_m(m2)

    if d_pad != d_in:
        x_bf16 = jnp.pad(x_bf16, ((0, 0), (0, d_pad - d_in)))
        w_bf16 = jnp.pad(w_bf16, ((0, d_pad - d_in), (0, 0)))
    if m_pad != m2:
        x_bf16 = jnp.pad(x_bf16, ((0, m_pad - m2), (0, 0)))

    grid = (m_pad // tile_m, d_pad // tile_k)

    raw = (2 * (tile_m * tile_k * 2)          # x block, double buffered
           + 2 * (tile_k * n_out * 2)         # w block, double buffered
           + 2 * (tile_m * n_out * 2)         # bf16 h block, double buffered
           + tile_m * n_out * 4)              # f32 accumulator scratch
    cost = pl.CostEstimate(
        flops=2 * m_pad * d_pad * n_out,
        transcendentals=0,
        bytes_accessed=(m_pad * d_pad * 2 + grid[0] * d_pad * n_out * 2
                        + m_pad * n_out * 2))

    h = pl.pallas_call(
        encoder_kernel,
        out_shape=jax.ShapeDtypeStruct((m_pad, n_out), jnp.bfloat16),
        grid_spec=pltpu.PrefetchScalarGridSpec(
            num_scalar_prefetch=0,
            grid=grid,
            in_specs=[
                pl.BlockSpec((tile_m, tile_k), lambda i, k: (i, k)),
                # TODO(synk): on v5e, consider pipeline_mode=pl.Buffered(3) here
                # if profiling shows the weight DMA exposed.
                pl.BlockSpec((tile_k, n_out), lambda i, k: (k, 0)),
            ],
            out_specs=pl.BlockSpec((tile_m, n_out), lambda i, k: (i, 0)),
            scratch_shapes=[pltpu.VMEM((tile_m, n_out), jnp.float32)],
        ),
        compiler_params=pltpu.CompilerParams(
            dimension_semantics=("parallel", "arbitrary"),
            vmem_limit_bytes=_vmem_request(raw, _vmem_ceiling()),
        ),
        cost_estimate=cost,
    )(x_bf16, w_bf16)

    return h[:m2] if m_pad != m2 else h


# ----------------------------------------------------------------------------
# Kernel 2: projection head + per-view BatchNorm1d + L2 normalize -> z (bf16)
# ----------------------------------------------------------------------------
def head_kernel(h_ref, w1_ref, g1_ref, b1_ref, w2_ref, g2_ref, b2_ref,
                z_ref, *, batch):
    eps_bn = jnp.float32(1e-5)        # PyTorch BatchNorm1d eps
    eps_norm_sq = jnp.float32(1e-24)  # (F.normalize eps=1e-12)^2
    n = h_ref.shape[0]
    inv_b = jnp.float32(1.0 / batch)

    # per-view row masks from one skinny iota -- no sublane slices / concats.
    rows = jax.lax.broadcasted_iota(jnp.int32, (n, 1), 0)
    mi = (rows < batch).astype(jnp.float32)   # rows of view i
    mj = jnp.float32(1.0) - mi                # rows of view j

    def bn_per_view(v, gamma, beta):
        # The PyTorch module runs self.mlp(h_i) and self.mlp(h_j) separately,
        # so BatchNorm1d training stats are computed per augmented view.
        mu_i = jnp.sum(v * mi, axis=0, keepdims=True) * inv_b
        mu_j = jnp.sum(v * mj, axis=0, keepdims=True) * inv_b
        d = v - (mi * mu_i + mj * mu_j)
        var_i = jnp.sum(d * d * mi, axis=0, keepdims=True) * inv_b
        var_j = jnp.sum(d * d * mj, axis=0, keepdims=True) * inv_b
        inv = jax.lax.rsqrt(mi * var_i + mj * var_j + eps_bn)
        return d * inv * gamma + beta

    # projection head: both views stacked -> one MXU pass per weight.
    a = jax.lax.dot_general(h_ref[...], w1_ref[...],
                            dimension_numbers=(((1,), (0,)), ((), ())),
                            preferred_element_type=jnp.float32)
    a = jnp.maximum(bn_per_view(a, g1_ref[...], b1_ref[...]), 0.0)
    z = jax.lax.dot_general(a.astype(jnp.bfloat16), w2_ref[...],
                            dimension_numbers=(((1,), (0,)), ((), ())),
                            preferred_element_type=jnp.float32)
    z = bn_per_view(z, g2_ref[...], b2_ref[...])

    # L2 normalize rows (== F.normalize(p=2, dim=1)).
    ss = jnp.sum(z * z, axis=1, keepdims=True)
    z = z * jax.lax.rsqrt(jnp.maximum(ss, eps_norm_sq))
    z_ref[...] = z.astype(z_ref.dtype)


def _project(h_bf16, w1, g1, b1, w2, g2, b2, batch):
    n, f = h_bf16.shape
    dim = w2.shape[1]
    vmem = pl.BlockSpec(memory_space=pltpu.MemorySpace.VMEM)
    raw = (n * f * 2 + f * f * 2 + f * dim * 2 + n * dim * 2
           + n * f * 4 + n * dim * 4 + 4 * (f + dim) * 4)
    cost = pl.CostEstimate(flops=2 * n * f * f + 2 * n * f * dim,
                           transcendentals=4 * n,
                           bytes_accessed=raw)
    return pl.pallas_call(
        functools.partial(head_kernel, batch=batch),
        out_shape=jax.ShapeDtypeStruct((n, dim), jnp.bfloat16),
        in_specs=[vmem] * 7,
        out_specs=vmem,
        compiler_params=pltpu.CompilerParams(
            vmem_limit_bytes=_vmem_request(raw, _vmem_ceiling())),
        cost_estimate=cost,
    )(h_bf16, w1, g1, b1, w2, g2, b2)


# ----------------------------------------------------------------------------
# Kernel 3: flash-style tiled NT-Xent (online LSE, never materializes (2B,2B))
# ----------------------------------------------------------------------------
def ntxent_kernel(zq_ref, zk_ref, out_ref, m_sc, l_sc, p_sc,
                  *, temperature, batch, n_total):
    qi = pl.program_id(0)
    ki = pl.program_id(1)
    tq = zq_ref.shape[0]
    tk = zk_ref.shape[0]
    inv_t = jnp.float32(1.0 / temperature)

    @pl.when(ki == 0)
    def _():
        m_sc[...] = jnp.full_like(m_sc, -jnp.inf)
        l_sc[...] = jnp.zeros_like(l_sc)
        p_sc[...] = jnp.zeros_like(p_sc)

    # similarity tile: contract last dims of both operands -> no transpose.
    sim = jax.lax.dot_general(zq_ref[...], zk_ref[...],
                              dimension_numbers=(((1,), (1,)), ((), ())),
                              preferred_element_type=jnp.float32) * inv_t

    # global row/col ids of this tile from two skinny iotas.
    row_ids = qi * tq + jax.lax.broadcasted_iota(jnp.int32, (tq, 1), 0)
    col_ids = ki * tk + jax.lax.broadcasted_iota(jnp.int32, (1, tk), 1)

    # positive logit: sim[i, (i + B) mod 2B], taken from the same bf16 sim
    # tile as the denominator (exactly "take sim[i, i+B]").
    pos_col = jnp.where(row_ids + batch < n_total,
                        row_ids + batch, row_ids + batch - n_total)
    p_sc[...] += jnp.sum(jnp.where(col_ids == pos_col, sim, 0.0),
                         axis=1, keepdims=True)

    # mask self-similarity and zero-padded key rows out of the denominator.
    invalid = (col_ids == row_ids) | (col_ids >= n_total)
    sim = jnp.where(invalid, jnp.float32(-1e9), sim)

    # online log-sum-exp over key tiles.
    m_prev = m_sc[...]
    m_new = jnp.maximum(m_prev, jnp.max(sim, axis=1, keepdims=True))
    l_sc[...] = (jnp.exp(m_prev - m_new) * l_sc[...]
                 + jnp.sum(jnp.exp(sim - m_new), axis=1, keepdims=True))
    m_sc[...] = m_new

    @pl.when(ki == pl.num_programs(1) - 1)
    def _():
        lse = m_sc[...] + jnp.log(l_sc[...])
        # lane-dense (tq, 128) broadcast so the writeback is an unmasked vst.
        out_ref[...] = jnp.broadcast_to(lse - p_sc[...], out_ref.shape)


def _ntxent_loss(z_bf16, temperature, batch):
    n, dim = z_bf16.shape
    if n <= 256:
        tile, n_pad = n, n
    else:
        tile = 256
        n_pad = _round_up(n, tile)
        if n_pad != n:
            z_bf16 = jnp.pad(z_bf16, ((0, n_pad - n), (0, 0)))
    grid = (n_pad // tile, n_pad // tile)

    raw = 4 * (tile * dim * 2) + 2 * (tile * 128 * 4) + 3 * tile * 4
    cost = pl.CostEstimate(
        flops=2 * n_pad * n_pad * dim,
        transcendentals=n_pad * n_pad,
        bytes_accessed=grid[0] * n_pad * dim * 2 + n_pad * dim * 2
                       + n_pad * 128 * 4)

    per_row = pl.pallas_call(
        functools.partial(ntxent_kernel, temperature=temperature,
                          batch=batch, n_total=n),
        out_shape=jax.ShapeDtypeStruct((n_pad, 128), jnp.float32),
        grid_spec=pltpu.PrefetchScalarGridSpec(
            num_scalar_prefetch=0,
            grid=grid,
            in_specs=[
                pl.BlockSpec((tile, dim), lambda qi, ki: (qi, 0)),
                pl.BlockSpec((tile, dim), lambda qi, ki: (ki, 0)),
            ],
            out_specs=pl.BlockSpec((tile, 128), lambda qi, ki: (qi, 0)),
            scratch_shapes=[pltpu.VMEM((tile, 1), jnp.float32)] * 3,
        ),
        compiler_params=pltpu.CompilerParams(
            dimension_semantics=("parallel", "arbitrary"),
            vmem_limit_bytes=_vmem_request(raw, _vmem_ceiling()),
        ),
        cost_estimate=cost,
    )(z_bf16, z_bf16)

    per_row = per_row[:n, 0]
    return jnp.mean(per_row)


# ----------------------------------------------------------------------------
# Wrapper
# ----------------------------------------------------------------------------
def simclr_forward(im1, im2, params, temperature=0.1):
    """im1, im2: (B, C, H, W) float arrays. Returns scalar NT-Xent loss."""
    B = im1.shape[0]
    bf = jnp.bfloat16
    # Cast each view while flattening, then one bf16 concat: a single bf16
    # write of the stacked batch instead of f32 concat + separate f32->bf16
    # pass (removes ~2 full HBM passes over the (2B, C*H*W) input).
    x = jnp.concatenate([im1.reshape(B, -1).astype(bf),
                         im2.reshape(B, -1).astype(bf)], axis=0)

    h = _encode(x, params["w_enc"].astype(bf))                 # (2B, F) bf16
    z = _project(h, params["w1"].astype(bf), params["g1"], params["b1"],
                 params["w2"].astype(bf), params["g2"], params["b2"], B)
    return _ntxent_loss(z, temperature, B)


# ----------------------------------------------------------------------------
# Pure-JAX reference (mirrors the kernel's bf16-MXU-operand policy so the
# correctness check is tight).
# ----------------------------------------------------------------------------
def reference_forward(im1, im2, params, temperature=0.1):
    B = im1.shape[0]
    bf = jnp.bfloat16
    x = jnp.concatenate([im1.reshape(B, -1).astype(bf),
                         im2.reshape(B, -1).astype(bf)], axis=0)

    h = jnp.maximum(
        jnp.dot(x, params["w_enc"].astype(bf),
                preferred_element_type=jnp.float32), 0.0).astype(bf)

    def bn(v, g, b):
        mu = jnp.mean(v, axis=0, keepdims=True)
        var = jnp.mean((v - mu) ** 2, axis=0, keepdims=True)
        return (v - mu) * jax.lax.rsqrt(var + 1e-5) * g + b

    def bn_pv(v, g, b):
        return jnp.concatenate([bn(v[:B], g, b), bn(v[B:], g, b)], axis=0)

    a = jnp.maximum(
        bn_pv(jnp.dot(h, params["w1"].astype(bf),
                      preferred_element_type=jnp.float32),
              params["g1"], params["b1"]), 0.0)
    z = bn_pv(jnp.dot(a.astype(bf), params["w2"].astype(bf),
                      preferred_element_type=jnp.float32),
              params["g2"], params["b2"])
    z = z * jax.lax.rsqrt(jnp.maximum(jnp.sum(z * z, 1, keepdims=True), 1e-24))

    n = 2 * B
    zb = z.astype(bf)
    sim = jnp.dot(zb, zb.T, preferred_element_type=jnp.float32) / temperature
    idx = jnp.arange(n)
    pos = sim[idx, (idx + B) % n]
    sim_m = jnp.where(idx[:, None] == idx[None, :], -1e9, sim)
    m = jnp.max(sim_m, axis=1)
    lse = m + jnp.log(jnp.sum(jnp.exp(sim_m - m[:, None]), axis=1))
    return jnp.mean(lse - pos)


def init_params(key, d_in, n_features, dim):
    k_enc, k1, k2 = jax.random.split(key, 3)
    scale_enc = 1.0 / jnp.sqrt(d_in)
    scale1 = 1.0 / jnp.sqrt(n_features)
    return {
        # TODO(synk): real encoder is injected (e.g. resnet18); bias-free
        # Linear + ReLU stand-in producing n_features per sample.
        "w_enc": (jax.random.normal(k_enc, (d_in, n_features), jnp.float32)
                  * scale_enc),
        "w1": jax.random.normal(k1, (n_features, n_features), jnp.float32)
              * scale1,
        "g1": jnp.ones((1, n_features), jnp.float32),
        "b1": jnp.zeros((1, n_features), jnp.float32),
        "w2": jax.random.normal(k2, (n_features, dim), jnp.float32) * scale1,
        "g2": jnp.ones((1, dim), jnp.float32),
        "b2": jnp.zeros((1, dim), jnp.float32),
    }


if __name__ == "__main__":
    B, C, H, W = 2, 4, 16, 16
    n_features, dim = 128, 128     # dim=128 is the module default
    temperature = 0.1

    key = jax.random.PRNGKey(0)
    k_im1, k_im2, k_par = jax.random.split(key, 3)
    im1 = jax.random.normal(k_im1, (B, C, H, W), jnp.float32)
    im2 = jax.random.normal(k_im2, (B, C, H, W), jnp.float32)
    params = init_params(k_par, C * H * W, n_features, dim)

    loss = jax.block_until_ready(simclr_forward(im1, im2, params, temperature))
    ref = jax.block_until_ready(reference_forward(im1, im2, params, temperature))

    assert jnp.isfinite(loss), "kernel produced non-finite loss"
    assert jnp.allclose(loss, ref, rtol=5e-3, atol=5e-3), (loss, ref)

    print("KERNEL_OK")
</pallas_src>

<mosaic_0001>
module attributes {stable_mosaic.version = 11 : i64} {
  func.func @encoder_kernel(%arg0: i32, %arg1: i32, %arg2: memref<4x512xbf16, #tpu.memory_space<vmem>>, %arg3: memref<512x128xbf16, #tpu.memory_space<vmem>>, %arg4: memref<4x128xbf16, #tpu.memory_space<vmem>>, %arg5: memref<4x128xf32, #tpu.memory_space<vmem>>) attributes {dimension_semantics = [#tpu.dimension_semantics<parallel>, #tpu.dimension_semantics<arbitrary>], iteration_bounds = array<i64: 1, 2>, scalar_prefetch = 0 : i64, scratch_operands = 1 : i64, tpu.core_type = #tpu.core_type<tc>, window_params = [{transform_indices = @transform_0, window_bounds = array<i64: 4, 512>}, {transform_indices = @transform_1, window_bounds = array<i64: 512, 128>}, {transform_indices = @transform_2, window_bounds = array<i64: 4, 128>}]} {
    %c0_i32 = arith.constant 0 : i32
    %0 = arith.cmpi eq, %arg1, %c0_i32 : i32
    %1 = arith.extui %0 : i1 to i32
    %c0_i32_0 = arith.constant 0 : i32
    %2 = arith.cmpi ne, %1, %c0_i32_0 : i32
    scf.if %2 {
      %cst_9 = arith.constant 0.000000e+00 : f32
      %12 = vector.broadcast %cst_9 : f32 to vector<4x128xf32>
      %c0_10 = arith.constant 0 : index
      %c0_11 = arith.constant 0 : index
      %13 = vector.load %arg5[%c0_10, %c0_11] : memref<4x128xf32, #tpu.memory_space<vmem>>, vector<4x128xf32>
      tpu.vector_store %arg5[%c0_10, %c0_11], %12 {strides = array<i32>} : memref<4x128xf32, #tpu.memory_space<vmem>>, vector<4x128xf32>,
    } else {
    }
    %c0 = arith.constant 0 : index
    %c0_1 = arith.constant 0 : index
    %3 = vector.load %arg5[%c0, %c0_1] : memref<4x128xf32, #tpu.memory_space<vmem>>, vector<4x128xf32>
    %c0_2 = arith.constant 0 : index
    %c0_3 = arith.constant 0 : index
    %4 = vector.load %arg2[%c0_2, %c0_3] : memref<4x512xbf16, #tpu.memory_space<vmem>>, vector<4x512xbf16>
    %c0_4 = arith.constant 0 : index
    %c0_5 = arith.constant 0 : index
    %5 = vector.load %arg3[%c0_4, %c0_5] : memref<512x128xbf16, #tpu.memory_space<vmem>>, vector<512x128xbf16>
    %cst = arith.constant dense<0.000000e+00> : vector<4x128xf32>
    %6 = tpu.matmul %4, %5, %cst {dimension_numbers = #tpu.dot_dimension_numbers<[1], [0], [0], [1], [0, 0, 1, 1], [], []>} : vector<4x512xbf16>, vector<512x128xbf16>, vector<4x128xf32> -> vector<4x128xf32>
    %7 = arith.addf %3, %6 : vector<4x128xf32>
    %c0_6 = arith.constant 0 : index
    %c0_7 = arith.constant 0 : index
    %8 = vector.load %arg5[%c0_6, %c0_7] : memref<4x128xf32, #tpu.memory_space<vmem>>, vector<4x128xf32>
    tpu.vector_store %arg5[%c0_6, %c0_7], %7 {strides = array<i32>} : memref<4x128xf32, #tpu.memory_space<vmem>>, vector<4x128xf32>,
    %c1_i32 = arith.constant 1 : i32
    %9 = arith.cmpi eq, %arg1, %c1_i32 : i32
    %10 = arith.extui %9 : i1 to i32
    %c0_i32_8 = arith.constant 0 : i32
    %11 = arith.cmpi ne, %10, %c0_i32_8 : i32
    scf.if %11 {
      %c0_9 = arith.constant 0 : index
      %c0_10 = arith.constant 0 : index
      %12 = vector.load %arg5[%c0_9, %c0_10] : memref<4x128xf32, #tpu.memory_space<vmem>>, vector<4x128xf32>
      %cst_11 = arith.constant 0.000000e+00 : f32
      %13 = vector.broadcast %cst_11 : f32 to vector<4x128xf32>
      %14 = arith.maximumf %12, %13 : vector<4x128xf32>
      %15 = arith.truncf %14 : vector<4x128xf32> to vector<4x128xbf16>
      %c0_12 = arith.constant 0 : index
      %c0_13 = arith.constant 0 : index
      %16 = vector.load %arg4[%c0_12, %c0_13] : memref<4x128xbf16, #tpu.memory_space<vmem>>, vector<4x128xbf16>
      tpu.vector_store %arg4[%c0_12, %c0_13], %15 {strides = array<i32>} : memref<4x128xbf16, #tpu.memory_space<vmem>>, vector<4x128xbf16>,
    } else {
    }
    return
  }
  func.func @transform_0(%arg0: i32, %arg1: i32) -> (i32, i32) {
    %c0_i32 = arith.constant 0 : i32
    return %arg0, %arg1 : i32, i32
  }
  func.func @transform_1(%arg0: i32, %arg1: i32) -> (i32, i32) {
    %c0_i32 = arith.constant 0 : i32
    %c0_i32_0 = arith.constant 0 : i32
    return %arg1, %c0_i32 : i32, i32
  }
  func.func @transform_2(%arg0: i32, %arg1: i32) -> (i32, i32) {
    %c0_i32 = arith.constant 0 : i32
    %c0_i32_0 = arith.constant 0 : i32
    return %arg0, %c0_i32 : i32, i32
  }
}

</mosaic_0001>

<llo_original>
// kernel: tpu_custom_call.1
$region0: #{tpu_custom_call.1}
  #allocation0 [shape = 'u32[]', space=smem, size = 0x4, offset = 0x4, fixed_abs, tag = 'smem constant byte address 0x4 - core index']
  #allocation1 [shape = 'u32[144,128]{1,0:T(1,128)}', space=vmem, size = 0x12000, scoped, tag = 'internal scratch']
  #allocation2 [shape = 'f32[4,128]{1,0:T(4,128)}', space=vmem, size = 0x800, scoped, tag = 'scratch operand']
  %s0 = inlined_call_operand.hbm [shape: bf16[4,1024], index: 0, kind: input, shape index: {}]
  %s1 = inlined_call_operand.hbm [shape: bf16[1024,128], index: 1, kind: input, shape index: {}]
  %s2 = inlined_call_operand.hbm [shape: bf16[4,128], index: 2, kind: output, shape index: {}]
  %s3 = sld [smem:[#allocation0]]
  $region57: #{tpu_custom_call.1} parent=0
    _
  %s5 = ssub.s32 1, %s3
  %s6 = scalar_select 0, %s5, %s3
  $region1: #{tpu_custom_call.1} parent=0
    #allocation3 [shape = 'u8[8192]{0}', space=vmem, size = 0x2000, scoped, tag = 'input window, operand 0']
    #allocation4 [shape = 's32[2]{0}', space=sflag, size = 0x8, scoped, tag = 'scoped memory for tpu_custom_call.1']
    #allocation5 [shape = 's32[2]{0}', space=sflag, size = 0x8, scoped, tag = 'scoped memory for tpu_custom_call.1']
    #allocation6 [shape = 'u8[262144]{0}', space=vmem, size = 0x40000, scoped, tag = 'input window, operand 1']
    #allocation7 [shape = 's32[2]{0}', space=sflag, size = 0x8, scoped, tag = 'scoped memory for tpu_custom_call.1']
    #allocation8 [shape = 'u8[1024]{0}', space=vmem, size = 0x400, scoped, tag = 'output window, operand 0, single buffered']
    %7 = vsyncpa [#allocation4], 0
    %s8 = scalar_lea.sflag [#allocation4], 1
    %9 = vsyncpa %s8, 0
    %10 = vsyncpa [#allocation7], 0
    %s11 = scalar_lea.sflag [#allocation7], 1
    %12 = vsyncpa %s11, 0
    %13 = vsyncpa [#allocation5], 0
    loop: start=0, step=1, limit=4
    $region2: #{tpu_custom_call.1} parent=1 // loop_pre_header
      _
    $region3: #{tpu_custom_call.1} parent=1 // loop_header
      %s15 = sphi 0, %s19
      %p16 = scmp.ge.s32.totalorder %s15, 4
      %s22 = sphi 0, %s34
      %s23 = sphi 0, %s30
      %s24 = sphi 0, %s22
      %s25 = sphi 0, %s23
      %s26 = sphi 0, %s24
      %s27 = sphi 0, %s25
      %s39 = sphi 0, %s41
      %s42 = sphi 0, %s39
      %s43 = sphi 0, %s42
      %s59 = sphi 0, %s43
      %s65 = sphi 0, %s67
      %s68 = sphi 0, %s65
      %s69 = sphi 0, %s68
      %s85 = sphi 0, %s69
      %s91 = sphi 0, %s93
      %s94 = sphi 0, %s91
      %s95 = sphi 0, %s94
      %s111 = sphi 0, %s95
    $region4: #{tpu_custom_call.1} parent=1 // loop_header_branch
      %18 = sbr.rel (%p16) target = $region8
    $region5: #{tpu_custom_call.1} parent=1 // loop_body
      %s20 = ssub.s32 %s15, 1
      %s21 = ssub.s32 %s15, 2
      %s28 = sadd.s32 1, %s23
      %p29 = scmp.ge.s32.totalorder %s28, 2
      %s30 = scalar_select %p29, 0, %s28
      %s31 = sadd.s32 1, %s22
      %s32 = scalar_select %p29, %s31, %s22
      %p33 = scmp.ge.s32.totalorder %s32, 1
      %s34 = scalar_select %p33, 0, %s32
      %s35 = ssub.s32 %s22, %s34
      %s36 = ssub.s32 %s23, %s30
      %s37 = sor.u32 %s35, %s36
      %p38 = scmp.eq.s32.totalorder %s37, 0
      %s40 = sadd.s32 %s39, 1
      %s41 = scalar_select %p38, %s39, %s40
      %p44 = pneg %p38
      %p45 = scmp.eq.s32.totalorder %s15, 1
      %p46 = por %p44, %p45
      %p47 = scmp.ne.s32.totalorder %s39, %s42
      %p48 = scmp.eq.s32.totalorder %s15, 0
      %p49 = por %p47, %p48
      %p50 = scmp.ne.s32.totalorder %s39, %s42
      %p51 = scmp.eq.s32.totalorder %s20, 1
      %p52 = por %p50, %p51
      %p53 = scmp.ne.s32.totalorder %s42, %s43
      %p54 = scmp.eq.s32.totalorder %s20, 0
      %p55 = por %p53, %p54
      %p56 = scmp.ne.s32.totalorder %s42, %s43
      %p57 = scmp.eq.s32.totalorder %s21, 1
      %p58 = por %p56, %p57
      %p60 = scmp.ne.s32.totalorder %s43, %s59
      %p61 = scmp.eq.s32.totalorder %s21, 0
      %p62 = por %p60, %p61
      %s63 = ssub.s32 %s23, %s30
      %p64 = scmp.eq.s32.totalorder %s63, 0
      %s66 = sadd.s32 %s65, 1
      %s67 = scalar_select %p64, %s65, %s66
      %p70 = pneg %p64
      %p71 = scmp.eq.s32.totalorder %s15, 1
      %p72 = por %p70, %p71
      %p73 = scmp.ne.s32.totalorder %s65, %s68
      %p74 = scmp.eq.s32.totalorder %s15, 0
      %p75 = por %p73, %p74
      %p76 = scmp.ne.s32.totalorder %s65, %s68
      %p77 = scmp.eq.s32.totalorder %s20, 1
      %p78 = por %p76, %p77
      %p79 = scmp.ne.s32.totalorder %s68, %s69
      %p80 = scmp.eq.s32.totalorder %s20, 0
      %p81 = por %p79, %p80
      %p82 = scmp.ne.s32.totalorder %s68, %s69
      %p83 = scmp.eq.s32.totalorder %s21, 1
      %p84 = por %p82, %p83
      %p86 = scmp.ne.s32.totalorder %s69, %s85
      %p87 = scmp.eq.s32.totalorder %s21, 0
      %p88 = por %p86, %p87
      %s89 = ssub.s32 %s22, %s34
      %p90 = scmp.eq.s32.totalorder %s89, 0
      %s92 = sadd.s32 %s91, 1
      %s93 = scalar_select %p90, %s91, %s92
      %p96 = pneg %p90
      %p97 = scmp.eq.s32.totalorder %s15, 1
      %p98 = por %p96, %p97
      %p99 = scmp.ne.s32.totalorder %s91, %s94
      %p100 = scmp.eq.s32.totalorder %s15, 0
      %p101 = por %p99, %p100
      %p102 = scmp.ne.s32.totalorder %s91, %s94
      %p103 = scmp.eq.s32.totalorder %s20, 1
      %p104 = por %p102, %p103
      %p105 = scmp.ne.s32.totalorder %s94, %s95
      %p106 = scmp.eq.s32.totalorder %s20, 0
      %p107 = por %p105, %p106
      %p108 = scmp.ne.s32.totalorder %s94, %s95
      %p109 = scmp.eq.s32.totalorder %s21, 1
      %p110 = por %p108, %p109
      %p112 = scmp.ne.s32.totalorder %s95, %s111
      %p113 = scmp.eq.s32.totalorder %s21, 0
      %p114 = por %p112, %p113
      %p115 = scmp.le.s32.totalorder 1, %s15
      %p116 = scmp.lt.s32.totalorder %s15, 3
      %p117 = pnand %p115, %p116
      %p118 = pneg %p117
      // Predicated region
      $region9: #{tpu_custom_call.1} parent=5 // pred_check
        _
      $region10: #{tpu_custom_call.1} parent=5 // pred_check_branch
        %120 = sbr.rel (%p117) target = $region12
      $region11: #{tpu_custom_call.1} parent=5 // pred_region
        %s121 = ssub.s32 %s15, 1
      $region12: #{tpu_custom_call.1} parent=5 // pred_fallthru
        _
      %p122 = scmp.lt.s32.totalorder %s15, 2
      // Predicated region
      $region13: #{tpu_custom_call.1} parent=5 // pred_check
        %p123 = pneg %p122
      $region14: #{tpu_custom_call.1} parent=5 // pred_check_branch
        %125 = sbr.rel (%p123) target = $region16
      $region15: #{tpu_custom_call.1} parent=5 // pred_region
        // Predicated region
        $region17: #{tpu_custom_call.1} parent=15 // pred_check
          %p126 = pneg %p49
        $region18: #{tpu_custom_call.1} parent=15 // pred_check_branch
          %128 = sbr.rel (%p126) target = $region20
        $region19: #{tpu_custom_call.1} parent=15 // pred_region
          %s129 = sand.u32 %s39, 1
          %s130 = scalar_lea.sflag [#allocation4], %s129
          %s131 = sand.u32 %s39, 1
          %s132 = smul.addr %s131, 8
          %s133 = scalar_lea.vmem [#allocation3], %s132
          %s134 = smul.u32 4, %s23
          %s136 = ssub.s32 128, 128
          %137 = vsyncadd %s130, %s136
          %s138 = smul.addr %s22, 8
          %s139 = sadd.s32 %s134, %s138
          %s140 = smul.addr %s139, 32
          %s141 = scalar_lea.hbm %s0, %s140
          %s143 = sshll.u32 %s133, 4
          %s144 = int_to_ptr.vmem [resolvable:$true] %s143
          %146 = dma.hbm_to_vmem [thread:$0]  %s141, 128, %s144, %s130
        $region20: #{tpu_custom_call.1} parent=15 // pred_fallthru
          _
        // Predicated region
        $region21: #{tpu_custom_call.1} parent=15 // pred_check
          %p147 = pneg %p75
        $region22: #{tpu_custom_call.1} parent=15 // pred_check_branch
          %149 = sbr.rel (%p147) target = $region24
        $region23: #{tpu_custom_call.1} parent=15 // pred_region
          %s150 = sand.u32 %s65, 1
          %s151 = scalar_lea.sflag [#allocation7], %s150
          %s152 = sand.u32 %s65, 1
          %s153 = smul.addr %s152, 256
          %s154 = scalar_lea.vmem [#allocation6], %s153
          %s155 = smul.u32 64, %s23
          %s157 = ssub.s32 4096, 4096
          %158 = vsyncadd %s151, %s157
          %s159 = smul.addr %s155, 64
          %s160 = scalar_lea.hbm %s1, %s159
          %s161 = sshll.u32 %s154, 4
          %s162 = int_to_ptr.vmem [resolvable:$true] %s161
          %167 = dma.hbm_to_vmem [thread:$0]  %s160, 4096, %s162, %s151, 64, 64, 4
        $region24: #{tpu_custom_call.1} parent=15 // pred_fallthru
          _
      $region16: #{tpu_custom_call.1} parent=5 // pred_fallthru
        _
      %p168 = scmp.le.s32.totalorder 1, %s15
      %p169 = scmp.lt.s32.totalorder %s15, 3
      %p170 = pnand %p168, %p169
      %p171 = pneg %p170
      // Predicated region
      $region25: #{tpu_custom_call.1} parent=5 // pred_check
        _
      $region26: #{tpu_custom_call.1} parent=5 // pred_check_branch
        %173 = sbr.rel (%p170) target = $region28
      $region27: #{tpu_custom_call.1} parent=5 // pred_region
        %s174 = ssub.s32 %s15, 1
        %s175 = sand.u32 %s42, 1
        %s176 = scalar_lea.sflag [#allocation4], %s175
        %s177 = sand.u32 %s42, 1
        %s178 = smul.addr %s177, 8
        %s179 = scalar_lea.vmem [#allocation3], %s178
        // Predicated region
        $region29: #{tpu_custom_call.1} parent=27 // pred_check
          %p180 = pneg %p55
        $region30: #{tpu_custom_call.1} parent=27 // pred_check_branch
          %182 = sbr.rel (%p180) target = $region32
        $region31: #{tpu_custom_call.1} parent=27 // pred_region
          %183 = dma.done %s176, 128
        $region32: #{tpu_custom_call.1} parent=27 // pred_fallthru
          _
        %s184 = sand.u32 %s68, 1
        %s185 = scalar_lea.sflag [#allocation7], %s184
        %s186 = sand.u32 %s68, 1
        %s187 = smul.addr %s186, 256
        %s188 = scalar_lea.vmem [#allocation6], %s187
        // Predicated region
        $region33: #{tpu_custom_call.1} parent=27 // pred_check
          %p189 = pneg %p81
        $region34: #{tpu_custom_call.1} parent=27 // pred_check_branch
          %191 = sbr.rel (%p189) target = $region36
        $region35: #{tpu_custom_call.1} parent=27 // pred_region
          %192 = dma.done %s185, 4096
        $region36: #{tpu_custom_call.1} parent=27 // pred_fallthru
          _
        %s193 = sand.u32 %s42, 1
        %s194 = scalar_lea.sflag [#allocation4], %s193
        %s195 = sand.u32 %s42, 1
        %s196 = smul.addr %s195, 8
        %s197 = scalar_lea.vmem [#allocation3], %s196
        %p198 = pneg %p55
        %p199 = pneg %p52
        %s200 = sand.u32 %s68, 1
        %s201 = scalar_lea.sflag [#allocation7], %s200
        %s202 = sand.u32 %s68, 1
        %s203 = smul.addr %s202, 256
        %s204 = scalar_lea.vmem [#allocation6], %s203
        %p205 = pneg %p81
        %p206 = pneg %p78
        %p207 = pneg %p107
        %p208 = pneg %p104
        %s209 = smul.u32 4, %s25
        %s210 = smul.u32 64, %s25
        %p212 = scmp.eq.s32.totalorder %s25, 0
        // Predicated region
        $region37: #{tpu_custom_call.1} parent=27 // pred_check
          %p213 = pneg %p212
        $region38: #{tpu_custom_call.1} parent=27 // pred_check_branch
          %215 = sbr.rel (%p213) target = $region40
        $region39: #{tpu_custom_call.1} parent=27 // pred_region
          %216 = vst [vmem:[#allocation2] sm:$0xf] 0.0
        $region40: #{tpu_custom_call.1} parent=27 // pred_fallthru
          _
        %v217 = vld [vmem:[#allocation2] sm:$0xf]
        %v218 = vld [vmem:[%s179] sm:$0xff]
        %v219 = vld [vmem:[%s188] sm:$0xf]
        %v220 = vld [vmem:[%s188 + $0x4] sm:$0xf]
        %v221 = vld [vmem:[%s188 + $0x8] sm:$0xf]
        %v222 = vld [vmem:[%s188 + $0xc] sm:$0xf]
        %v223 = vld [vmem:[%s188 + $0x10] sm:$0xf]
        %v224 = vld [vmem:[%s188 + $0x14] sm:$0xf]
        %v225 = vld [vmem:[%s188 + $0x18] sm:$0xf]
        %v226 = vld [vmem:[%s188 + $0x1c] sm:$0xf]
        %v227 = vld [vmem:[%s188 + $0x20] sm:$0xf]
        %v228 = vld [vmem:[%s188 + $0x24] sm:$0xf]
        %v229 = vld [vmem:[%s188 + $0x28] sm:$0xf]
        %v230 = vld [vmem:[%s188 + $0x2c] sm:$0xf]
        %v231 = vld [vmem:[%s188 + $0x30] sm:$0xf]
        %v232 = vld [vmem:[%s188 + $0x34] sm:$0xf]
        %v233 = vld [vmem:[%s188 + $0x38] sm:$0xf]
        %v234 = vld [vmem:[%s188 + $0x3c] sm:$0xf]
        %v235 = vld [vmem:[%s188 + $0x40] sm:$0xf]
        %v236 = vld [vmem:[%s188 + $0x44] sm:$0xf]
        %v237 = vld [vmem:[%s188 + $0x48] sm:$0xf]
        %v238 = vld [vmem:[%s188 + $0x4c] sm:$0xf]
        %v239 = vld [vmem:[%s188 + $0x50] sm:$0xf]
        %v240 = vld [vmem:[%s188 + $0x54] sm:$0xf]
        %v241 = vld [vmem:[%s188 + $0x58] sm:$0xf]
        %v242 = vld [vmem:[%s188 + $0x5c] sm:$0xf]
        %v243 = vld [vmem:[%s188 + $0x60] sm:$0xf]
        %v244 = vld [vmem:[%s188 + $0x64] sm:$0xf]
        %v245 = vld [vmem:[%s188 + $0x68] sm:$0xf]
        %v246 = vld [vmem:[%s188 + $0x6c] sm:$0xf]
        %v247 = vld [vmem:[%s188 + $0x70] sm:$0xf]
        %v248 = vld [vmem:[%s188 + $0x74] sm:$0xf]
        %v249 = vld [vmem:[%s188 + $0x78] sm:$0xf]
        %v250 = vld [vmem:[%s188 + $0x7c] sm:$0xf]
        %v251 = vld [vmem:[%s188 + $0x80] sm:$0xf]
        %v252 = vld [vmem:[%s188 + $0x84] sm:$0xf]
        %v253 = vld [vmem:[%s188 + $0x88] sm:$0xf]
        %v254 = vld [vmem:[%s188 + $0x8c] sm:$0xf]
        %v255 = vld [vmem:[%s188 + $0x90] sm:$0xf]
        %v256 = vld [vmem:[%s188 + $0x94] sm:$0xf]
        %v257 = vld [vmem:[%s188 + $0x98] sm:$0xf]
        %v258 = vld [vmem:[%s188 + $0x9c] sm:$0xf]
        %v259 = vld [vmem:[%s188 + $0xa0] sm:$0xf]
        %v260 = vld [vmem:[%s188 + $0xa4] sm:$0xf]
        %v261 = vld [vmem:[%s188 + $0xa8] sm:$0xf]
        %v262 = vld [vmem:[%s188 + $0xac] sm:$0xf]
        %v263 = vld [vmem:[%s188 + $0xb0] sm:$0xf]
        %v264 = vld [vmem:[%s188 + $0xb4] sm:$0xf]
        %v265 = vld [vmem:[%s188 + $0xb8] sm:$0xf]
        %v266 = vld [vmem:[%s188 + $0xbc] sm:$0xf]
        %v267 = vld [vmem:[%s188 + $0xc0] sm:$0xf]
        %v268 = vld [vmem:[%s188 + $0xc4] sm:$0xf]
        %v269 = vld [vmem:[%s188 + $0xc8] sm:$0xf]
        %v270 = vld [vmem:[%s188 + $0xcc] sm:$0xf]
        %v271 = vld [vmem:[%s188 + $0xd0] sm:$0xf]
        %v272 = vld [vmem:[%s188 + $0xd4] sm:$0xf]
        %v273 = vld [vmem:[%s188 + $0xd8] sm:$0xf]
        %v274 = vld [vmem:[%s188 + $0xdc] sm:$0xf]
        %v275 = vld [vmem:[%s188 + $0xe0] sm:$0xf]
        %v276 = vld [vmem:[%s188 + $0xe4] sm:$0xf]
        %v277 = vld [vmem:[%s188 + $0xe8] sm:$0xf]
        %v278 = vld [vmem:[%s188 + $0xec] sm:$0xf]
        %v279 = vld [vmem:[%s188 + $0xf0] sm:$0xf]
        %v280 = vld [vmem:[%s188 + $0xf4] sm:$0xf]
        %v281 = vld [vmem:[%s188 + $0xf8] sm:$0xf]
        %v282 = vld [vmem:[%s188 + $0xfc] sm:$0xf]
        %v284 = vcombine.high %v218, %v218
        %v286 = vunpack.c.l.s4 1983009808
        %v287 = vunpack.c.0.s8 %v286
        %v288 = vlaneseq
        %v289 = vshrl.u32 %v288, 7
        %v290 = vsub.s32 %v287, %v289
        %v291 = vrot.slane %v218, %v290
        %v293 = vunpack.c.l.s4 1983009808
        %v294 = vunpack.c.0.s8 %v293
        %v295 = vlaneseq
        %v296 = vshrl.u32 %v295, 7
        %v297 = vsub.s32 %v294, %v296
        %v298 = vrot.slane %v284, %v297
        %v299 = vcombine.high %v291, %v291
        %v300 = vcombine.high %v298, %v298
        %v369 = vunpack.c.l.b16 %v219
        %v370 = vunpack.c.l.b16 %v220
        %v371 = vunpack.c.l.b16 %v221
        %v372 = vunpack.c.l.b16 %v222
        %v373 = vunpack.c.l.b16 %v223
        %v374 = vunpack.c.l.b16 %v224
        %v375 = vunpack.c.l.b16 %v225
        %v376 = vunpack.c.l.b16 %v226
        %v377 = vunpack.c.l.b16 %v227
        %v378 = vunpack.c.l.b16 %v228
        %v379 = vunpack.c.l.b16 %v229
        %v380 = vunpack.c.l.b16 %v230
        %v381 = vunpack.c.l.b16 %v231
        %v382 = vunpack.c.l.b16 %v232
        %v383 = vunpack.c.l.b16 %v233
        %v384 = vunpack.c.l.b16 %v234
        %v385 = vunpack.c.l.b16 %v235
        %v386 = vunpack.c.l.b16 %v236
        %v387 = vunpack.c.l.b16 %v237
        %v388 = vunpack.c.l.b16 %v238
        %v389 = vunpack.c.l.b16 %v239
        %v390 = vunpack.c.l.b16 %v240
        %v391 = vunpack.c.l.b16 %v241
        %v392 = vunpack.c.l.b16 %v242
        %v393 = vunpack.c.l.b16 %v243
        %v394 = vunpack.c.l.b16 %v244
        %v395 = vunpack.c.l.b16 %v245
        %v396 = vunpack.c.l.b16 %v246
        %v397 = vunpack.c.l.b16 %v247
        %v398 = vunpack.c.l.b16 %v248
        %v399 = vunpack.c.l.b16 %v249
        %v400 = vunpack.c.l.b16 %v250
        %v401 = vunpack.c.l.b16 %v251
        %v402 = vunpack.c.l.b16 %v252
        %v403 = vunpack.c.l.b16 %v253
        %v404 = vunpack.c.l.b16 %v254
        %v405 = vunpack.c.l.b16 %v255
        %v406 = vunpack.c.l.b16 %v256
        %v407 = vunpack.c.l.b16 %v257
        %v408 = vunpack.c.l.b16 %v258
        %v409 = vunpack.c.l.b16 %v259
        %v410 = vunpack.c.l.b16 %v260
        %v411 = vunpack.c.l.b16 %v261
        %v412 = vunpack.c.l.b16 %v262
        %v413 = vunpack.c.l.b16 %v263
        %v414 = vunpack.c.l.b16 %v264
        %v415 = vunpack.c.l.b16 %v265
        %v416 = vunpack.c.l.b16 %v266
        %v417 = vunpack.c.l.b16 %v267
        %v418 = vunpack.c.l.b16 %v268
        %v419 = vunpack.c.l.b16 %v269
        %v420 = vunpack.c.l.b16 %v270
        %v421 = vunpack.c.l.b16 %v271
        %v422 = vunpack.c.l.b16 %v272
        %v423 = vunpack.c.l.b16 %v273
        %v424 = vunpack.c.l.b16 %v274
        %v425 = vunpack.c.l.b16 %v275
        %v426 = vunpack.c.l.b16 %v276
        %v427 = vunpack.c.l.b16 %v277
        %v428 = vunpack.c.l.b16 %v278
        %v429 = vunpack.c.l.b16 %v279
        %v430 = vunpack.c.l.b16 %v280
        %v431 = vunpack.c.l.b16 %v281
        %v432 = vunpack.c.l.b16 %v282
        %v433 = vpack.c.b16 %v370, %v369
        %v434 = vpack.c.b16 %v372, %v371
        %v435 = vpack.c.b16 %v374, %v373
        %v436 = vpack.c.b16 %v376, %v375
        %v437 = vpack.c.b16 %v378, %v377
        %v438 = vpack.c.b16 %v380, %v379
        %v439 = vpack.c.b16 %v382, %v381
        %v440 = vpack.c.b16 %v384, %v383
        %v441 = vpack.c.b16 %v386, %v385
        %v442 = vpack.c.b16 %v388, %v387
        %v443 = vpack.c.b16 %v390, %v389
        %v444 = vpack.c.b16 %v392, %v391
        %v445 = vpack.c.b16 %v394, %v393
        %v446 = vpack.c.b16 %v396, %v395
        %v447 = vpack.c.b16 %v398, %v397
        %v448 = vpack.c.b16 %v400, %v399
        %v449 = vpack.c.b16 %v402, %v401
        %v450 = vpack.c.b16 %v404, %v403
        %v451 = vpack.c.b16 %v406, %v405
        %v452 = vpack.c.b16 %v408, %v407
        %v453 = vpack.c.b16 %v410, %v409
        %v454 = vpack.c.b16 %v412, %v411
        %v455 = vpack.c.b16 %v414, %v413
        %v456 = vpack.c.b16 %v416, %v415
        %v457 = vpack.c.b16 %v418, %v417
        %v458 = vpack.c.b16 %v420, %v419
        %v459 = vpack.c.b16 %v422, %v421
        %v460 = vpack.c.b16 %v424, %v423
        %v461 = vpack.c.b16 %v426, %v425
        %v462 = vpack.c.b16 %v428, %v427
        %v463 = vpack.c.b16 %v430, %v429
        %v464 = vpack.c.b16 %v432, %v431
        %497 = vmatprep.subr.bf16.mxu0 0
        %498 = vmatpush1.bf16.msra.mxu0 %v433
        %499 = vmatprep.subr.bf16.mxu0 0
        %500 = vmatpush1.bf16.msra.mxu0 %v434
        %501 = vmatprep.subr.bf16.mxu0 0
        %502 = vmatpush1.bf16.msra.mxu0 %v435
        %503 = vmatprep.subr.bf16.mxu0 0
        %504 = vmatpush1.bf16.msra.mxu0 %v436
        %505 = vmatprep.subr.bf16.mxu0 0
        %506 = vmatpush1.bf16.msra.mxu0 %v437
        %507 = vmatprep.subr.bf16.mxu0 0
        %508 = vmatpush1.bf16.msra.mxu0 %v438
        %509 = vmatprep.subr.bf16.mxu0 0
        %510 = vmatpush1.bf16.msra.mxu0 %v439
        %511 = vmatprep.subr.bf16.mxu0 0
        %512 = vmatpush1.bf16.msra.mxu0 %v440
        %513 = vmatprep.subr.bf16.mxu0 0
        %514 = vmatpush1.bf16.msra.mxu0 %v441
        %515 = vmatprep.subr.bf16.mxu0 0
        %516 = vmatpush1.bf16.msra.mxu0 %v442
        %517 = vmatprep.subr.bf16.mxu0 0
        %518 = vmatpush1.bf16.msra.mxu0 %v443
        %519 = vmatprep.subr.bf16.mxu0 0
        %520 = vmatpush1.bf16.msra.mxu0 %v444
        %521 = vmatprep.subr.bf16.mxu0 0
        %522 = vmatpush1.bf16.msra.mxu0 %v445
        %523 = vmatprep.subr.bf16.mxu0 0
        %524 = vmatpush1.bf16.msra.mxu0 %v446
        %525 = vmatprep.subr.bf16.mxu0 0
        %526 = vmatpush1.bf16.msra.mxu0 %v447
        %527 = vmatprep.subr.bf16.mxu0 0
        %528 = vmatpush1.bf16.msra.mxu0 %v448
        %529 = vmatprep.mubr.bf16.mxu0 %v299
        %530 = vmatmul.mubr.bf16.gmra.mrb[0].mxu0 %v291
        %v531 = vpop.f32.mrb[0].mxu0
        %v532 = vadd.f32 0.0, %v531
        %v533 = vpop.f32.mrb[0].mxu0
        %v534 = vpop.f32.mrb[0].mxu0
        %v535 = vpop.f32.mrb[0].mxu0
        %536 = vdwg.mxu0
        %537 = vmatprep.subr.bf16.mxu0 0
        %538 = vmatpush1.bf16.msra.mxu0 %v449
        %539 = vmatprep.subr.bf16.mxu0 0
        %540 = vmatpush1.bf16.msra.mxu0 %v450
        %541 = vmatprep.subr.bf16.mxu0 0
        %542 = vmatpush1.bf16.msra.mxu0 %v451
        %543 = vmatprep.subr.bf16.mxu0 0
        %544 = vmatpush1.bf16.msra.mxu0 %v452
        %545 = vmatprep.subr.bf16.mxu0 0
        %546 = vmatpush1.bf16.msra.mxu0 %v453
        %547 = vmatprep.subr.bf16.mxu0 0
        %548 = vmatpush1.bf16.msra.mxu0 %v454
        %549 = vmatprep.subr.bf16.mxu0 0
        %550 = vmatpush1.bf16.msra.mxu0 %v455
        %551 = vmatprep.subr.bf16.mxu0 0
        %552 = vmatpush1.bf16.msra.mxu0 %v456
        %553 = vmatprep.subr.bf16.mxu0 0
        %554 = vmatpush1.bf16.msra.mxu0 %v457
        %555 = vmatprep.subr.bf16.mxu0 0
        %556 = vmatpush1.bf16.msra.mxu0 %v458
        %557 = vmatprep.subr.bf16.mxu0 0
        %558 = vmatpush1.bf16.msra.mxu0 %v459
        %559 = vmatprep.subr.bf16.mxu0 0
        %560 = vmatpush1.bf16.msra.mxu0 %v460
        %561 = vmatprep.subr.bf16.mxu0 0
        %562 = vmatpush1.bf16.msra.mxu0 %v461
        %563 = vmatprep.subr.bf16.mxu0 0
        %564 = vmatpush1.bf16.msra.mxu0 %v462
        %565 = vmatprep.subr.bf16.mxu0 0
        %566 = vmatpush1.bf16.msra.mxu0 %v463
        %567 = vmatprep.subr.bf16.mxu0 0
        %568 = vmatpush1.bf16.msra.mxu0 %v464
        %569 = vmatprep.mubr.bf16.mxu0 %v300
        %570 = vmatmul.mubr.bf16.gmra.mrb[0].mxu0 %v298
        %v571 = vpop.f32.mrb[0].mxu0
        %v572 = vadd.f32 %v532, %v571
        %v573 = vpop.f32.mrb[0].mxu0
        %v574 = vpop.f32.mrb[0].mxu0
        %v575 = vpop.f32.mrb[0].mxu0
        %576 = vdwg.mxu0
        %v577 = vadd.f32 %v217, %v572
        %578 = vst [vmem:[#allocation2] sm:$0xf] %v577
        %p579 = scmp.eq.s32.totalorder %s25, 1
        // Predicated region
        $region41: #{tpu_custom_call.1} parent=27 // pred_check
          %p580 = pneg %p579
        $region42: #{tpu_custom_call.1} parent=27 // pred_check_branch
          %582 = sbr.rel (%p580) target = $region44
        $region43: #{tpu_custom_call.1} parent=27 // pred_region
          %v583 = vld [vmem:[#allocation2] sm:$0xf]
          %v584 = vmax.f32 %v583, 0.0
          %v585 = vpack.c.bf16 %v584, %v584
          %586 = vst [vmem:[#allocation8] sm:$0x3] %v585
        $region44: #{tpu_custom_call.1} parent=27 // pred_fallthru
          _
        // Predicated region
        $region45: #{tpu_custom_call.1} parent=27 // pred_check
          %p587 = pneg %p104
        $region46: #{tpu_custom_call.1} parent=27 // pred_check_branch
          %589 = sbr.rel (%p587) target = $region48
        $region47: #{tpu_custom_call.1} parent=27 // pred_region
          %s591 = ssub.s32 32, 32
          %592 = vsyncadd [#allocation5], %s591
          %s593 = smul.addr %s24, 32
          %s594 = scalar_lea.hbm %s2, %s593
          %s596 = sshll.u32 [#allocation8], 4
          %s597 = int_to_ptr.vmem [resolvable:$true] %s596
          %599 = dma.vmem_to_hbm [thread:$0]  %s597, 32, %s594, [#allocation5]
        $region48: #{tpu_custom_call.1} parent=27 // pred_fallthru
          _
        // Predicated region
        $region49: #{tpu_custom_call.1} parent=27 // pred_check
          %p600 = pneg %p104
        $region50: #{tpu_custom_call.1} parent=27 // pred_check_branch
          %602 = sbr.rel (%p600) target = $region52
        $region51: #{tpu_custom_call.1} parent=27 // pred_region
          %603 = dma.done [#allocation5], 32
        $region52: #{tpu_custom_call.1} parent=27 // pred_fallthru
          _
      $region28: #{tpu_custom_call.1} parent=5 // pred_fallthru
        _
      %p604 = scmp.le.s32.totalorder 2, %s15
      // Predicated region
      $region53: #{tpu_custom_call.1} parent=5 // pred_check
        %p605 = pneg %p604
      $region54: #{tpu_custom_call.1} parent=5 // pred_check_branch
        %607 = sbr.rel (%p605) target = $region56
      $region55: #{tpu_custom_call.1} parent=5 // pred_region
        %s608 = ssub.s32 %s15, 2
      $region56: #{tpu_custom_call.1} parent=5 // pred_fallthru
        _
    $region6: #{tpu_custom_call.1} parent=1 // loop_footer
      %s19 = sadd.s32 1, %s15
    $region7: #{tpu_custom_call.1} parent=1 // loop_footer_branch
      %14 = sbr.rel target = $region3
    $region8: #{tpu_custom_call.1} parent=1 // loop_exit
      _
    %609 = vsyncpa [#allocation4], 1
    %s610 = scalar_lea.sflag [#allocation4], 1
    %611 = vsyncpa %s610, 1
    %612 = vsyncpa [#allocation7], 1
    %s613 = scalar_lea.sflag [#allocation7], 1
    %614 = vsyncpa %s613, 1
    %615 = vsyncpa [#allocation5], 1
    %s616 = scalar_lea.sflag [#allocation5], 1
    %617 = vsyncpa %s616, 1

</llo_original>
